<compile_context>
chip_gen: v6e
topology: v6e:2x2x1
jax: 0.10.0
libtpu: 0.0.40
codegen_flags: <defaults>
</compile_context>

<pallas_src>
import math

import jax
import jax.numpy as jnp
from jax.experimental import pallas as pl
from jax.experimental.pallas import tpu as pltpu

_LANES = 128
_TARGET_BLOCK_BYTES = 4 << 20                 # ~4 MiB per (rows, C) tile
_DEFAULT_SMALL_FALLBACK_BYTES = 512 * 1024    # below this, plain XLA mul wins


def _round_up(v, m):
    return ((v + m - 1) // m) * m


def _cdiv(a, b):
    return (a + b - 1) // b


def _num_tensorcores():
    # v7x has 2 TensorCores per chip; v5e/v6e have 1. Best-effort detection.
    try:
        kind = jax.devices()[0].device_kind.lower()
    except Exception:
        return 1
    return 2 if ("v7" in kind or "tpu7" in kind or "7x" in kind) else 1


def _prompt_dot_kernel(w_ref, x_ref, o_ref):
    # Pure VPU elementwise multiply; the (1, C) weight row broadcasts over
    # sublanes in-register -- free filler next to the HBM-bound DMA traffic.
    o_ref[...] = (x_ref[...] * w_ref[...]).astype(o_ref.dtype)


def prompt_dot_forward(embedding, weight, *,
                       small_fallback_bytes=_DEFAULT_SMALL_FALLBACK_BYTES):
    """embedding: (N, D), weight: (1, D) -> (N, D)  (embedding * weight)."""
    N, D = embedding.shape
    assert weight.shape == (1, D)

    itemsize = embedding.dtype.itemsize
    total_bytes = embedding.size * itemsize

    # Tiny inputs: pallas_call dispatch + DMA setup dwarfs the data moved;
    # XLA's fused broadcast-multiply is strictly faster there.
    if total_bytes <= small_fallback_bytes:
        return embedding * weight

    # ---- Lane-dense repack (free: contiguous row-major reshape, no copy).
    # If D is not already a multiple of 128, group g rows so the last (lane)
    # dim becomes a multiple of 128: (N, D) -> (N//g, g*D); the weight is
    # tiled to a single (1, g*D) row. Keeps every store full-width (no
    # vst.msk) and every DMA lane-dense.
    repacked = False
    x, w_row = embedding, weight
    if D % _LANES != 0:
        g = _LANES // math.gcd(D, _LANES)
        if N % g == 0:
            x = embedding.reshape(N // g, g * D)
            w_row = jnp.tile(weight, (1, g))
            repacked = True
        # else: fall back to (N, D); correct, but with masked partial lanes.
    R, C = x.shape

    # ---- Tile-size selection.
    # Dtype-aware sublane quantum: 8 rows (f32), 16 (bf16), 32 (int8/fp8).
    quantum = max(8, 32 // itemsize)
    rows_per_block = max(
        quantum, (_TARGET_BLOCK_BYTES // (C * itemsize)) // quantum * quantum)

    # v7x only: with plenty of work, guarantee >=2 blocks per TensorCore so
    # the "parallel" axis can shard across both cores and each core still
    # double-buffers. Never force an extra split on single-TC v5e/v6e.
    n_cores = _num_tensorcores()
    if n_cores >= 2 and R * C * itemsize >= 4 * _TARGET_BLOCK_BYTES:
        min_steps = 2 * n_cores
        rows_per_block = min(
            rows_per_block,
            max(quantum, _round_up(_cdiv(R, min_steps), quantum)))

    if rows_per_block >= R:
        # Whole array fits in one optimally sized tile: single full-array
        # block (always layout-legal), no padding, no forced split.
        rows_per_block = R
        grid = (1,)
    else:
        # Ragged last block is handled by Pallas (partial reads padded,
        # partial writes masked) -- no wrapper-side pad / slice.
        grid = (_cdiv(R, rows_per_block),)

    out = pl.pallas_call(
        _prompt_dot_kernel,
        out_shape=jax.ShapeDtypeStruct((R, C), embedding.dtype),
        grid_spec=pltpu.PrefetchScalarGridSpec(
            num_scalar_prefetch=0,
            grid=grid,
            in_specs=[
                # Weight: one (1, C) row, constant index_map -> fetched once
                # and kept resident; broadcast happens inside the kernel.
                pl.BlockSpec((1, C), lambda i: (0, 0)),
                # Embedding tile.
                pl.BlockSpec((rows_per_block, C), lambda i: (i, 0)),
            ],
            out_specs=pl.BlockSpec((rows_per_block, C), lambda i: (i, 0)),
        ),
        compiler_params=pltpu.CompilerParams(
            dimension_semantics=("parallel",),
            # 2x in + 2x out tiles at <=4 MiB each -> ~16 MiB; 32 MiB scoped
            # limit is safe on v5e/v6e (128 MiB VMEM) and v7x (64 MiB) alike.
            vmem_limit_bytes=32 << 20,
        ),
    )(w_row, x)

    if repacked:
        out = out.reshape(N, D)
    return out


if __name__ == "__main__":
    key = jax.random.PRNGKey(0)

    # (N, D, dtype): primary module shape (seq=8, hidden=32) plus shapes that
    # exercise the repack, non-repackable, bf16-quantum and multi-block paths.
    cases = [
        (8, 32, jnp.float32),      # primary shape; repack 32 -> 128 lanes
        (1000, 32, jnp.float32),   # repack, single full-array block
        (24, 48, jnp.float32),     # repack with g=8 -> 384 lanes
        (25, 48, jnp.float32),     # non-repackable fallback (masked lanes)
        (512, 192, jnp.bfloat16),  # bf16 sublane quantum, repack g=2
        (4100, 512, jnp.float32),  # multi-block grid with ragged last block
    ]

    ok = True
    for idx, (N, D, dtype) in enumerate(cases):
        k_w, k_x = jax.random.split(jax.random.fold_in(key, idx))
        # torch.Tensor(1, D) is uninitialized; use a normal draw for a
        # well-defined synthetic parameter.
        weight = jax.random.normal(k_w, (1, D), dtype=dtype)
        embedding = jax.random.normal(k_x, (N, D), dtype=dtype)

        out = prompt_dot_forward(embedding, weight, small_fallback_bytes=0)
        out = jax.block_until_ready(out)

        ref = embedding * weight
        ok &= bool(jnp.allclose(out.astype(jnp.float32),
                                ref.astype(jnp.float32),
                                atol=1e-6, rtol=1e-6))

    # Also exercise the small-input XLA fallback with its real default.
    w = jax.random.normal(key, (1, 32), dtype=jnp.float32)
    x = jax.random.normal(key, (8, 32), dtype=jnp.float32)
    ok &= bool(jnp.allclose(jax.block_until_ready(prompt_dot_forward(x, w)),
                            x * w))

    assert ok, "mismatch vs reference"
    print("KERNEL_OK")
</pallas_src>

<mosaic_0001>
module attributes {stable_mosaic.version = 11 : i64} {
  func.func @_prompt_dot_kernel(%arg0: i32, %arg1: memref<1x128xf32, #tpu.memory_space<vmem>>, %arg2: memref<2x128xf32, #tpu.memory_space<vmem>>, %arg3: memref<2x128xf32, #tpu.memory_space<vmem>>) attributes {dimension_semantics = [#tpu.dimension_semantics<parallel>], iteration_bounds = array<i64: 1>, scalar_prefetch = 0 : i64, scratch_operands = 0 : i64, tpu.core_type = #tpu.core_type<tc>, window_params = [{pipeline_mode = #tpu.pipeline_mode<synchronous>, transform_indices = @transform_0, window_bounds = array<i64: 1, 128>}, {transform_indices = @transform_1, window_bounds = array<i64: 2, 128>}, {transform_indices = @transform_2, window_bounds = array<i64: 2, 128>}]} {
    %c0 = arith.constant 0 : index
    %c0_0 = arith.constant 0 : index
    %0 = vector.load %arg2[%c0, %c0_0] : memref<2x128xf32, #tpu.memory_space<vmem>>, vector<2x128xf32>
    %c0_1 = arith.constant 0 : index
    %c0_2 = arith.constant 0 : index
    %1 = vector.load %arg1[%c0_1, %c0_2] : memref<1x128xf32, #tpu.memory_space<vmem>>, vector<1x128xf32>
    %2 = vector.broadcast %1 : vector<1x128xf32> to vector<2x128xf32>
    %3 = arith.mulf %0, %2 : vector<2x128xf32>
    %c0_3 = arith.constant 0 : index
    %c0_4 = arith.constant 0 : index
    %4 = vector.load %arg3[%c0_3, %c0_4] : memref<2x128xf32, #tpu.memory_space<vmem>>, vector<2x128xf32>
    tpu.vector_store %arg3[%c0_3, %c0_4], %3 {strides = array<i32>} : memref<2x128xf32, #tpu.memory_space<vmem>>, vector<2x128xf32>,
    return
  }
  func.func @transform_0(%arg0: i32) -> (i32, i32) {
    %c0_i32 = arith.constant 0 : i32
    %c0_i32_0 = arith.constant 0 : i32
    %c0_i32_1 = arith.constant 0 : i32
    return %c0_i32, %c0_i32_0 : i32, i32
  }
  func.func @transform_1(%arg0: i32) -> (i32, i32) {
    %c0_i32 = arith.constant 0 : i32
    %c0_i32_0 = arith.constant 0 : i32
    return %arg0, %c0_i32 : i32, i32
  }
  func.func @transform_2(%arg0: i32) -> (i32, i32) {
    %c0_i32 = arith.constant 0 : i32
    %c0_i32_0 = arith.constant 0 : i32
    return %arg0, %c0_i32 : i32, i32
  }
}

</mosaic_0001>

<llo_original>
// kernel: tpu_custom_call.1
$region0: #{tpu_custom_call.1}
  #allocation0 [shape = 'u32[]', space=smem, size = 0x4, offset = 0x4, fixed_abs, tag = 'smem constant byte address 0x4 - core index']
  #allocation1 [shape = 'u32[144,128]{1,0:T(1,128)}', space=vmem, size = 0x12000, scoped, tag = 'internal scratch']
  %s0 = inlined_call_operand.hbm [shape: f32[1,128], index: 0, kind: input, shape index: {}]
  %s1 = inlined_call_operand.hbm [shape: f32[2,128], index: 1, kind: input, shape index: {}]
  %s2 = inlined_call_operand.hbm [shape: f32[2,128], index: 2, kind: output, shape index: {}]
  %s3 = sld [smem:[#allocation0]]
  $region26: #{tpu_custom_call.1} parent=0
    _
  %s5 = ssub.s32 1, %s3
  %s6 = scalar_select 0, %s5, %s3
  $region1: #{tpu_custom_call.1} parent=0
    #allocation2 [shape = 'u8[512]{0}', space=vmem, size = 0x400, scoped, tag = 'input window, operand 0, single buffered']
    #allocation3 [shape = 's32[1]{0}', space=sflag, size = 0x4, scoped, tag = 'scoped memory for tpu_custom_call.1']
    #allocation4 [shape = 's32[1]{0}', space=sflag, size = 0x4, scoped, tag = 'scoped memory for tpu_custom_call.1']
    #allocation5 [shape = 'u8[1024]{0}', space=vmem, size = 0x400, scoped, tag = 'input window, operand 1, single buffered']
    #allocation6 [shape = 's32[1]{0}', space=sflag, size = 0x4, scoped, tag = 'scoped memory for tpu_custom_call.1']
    #allocation7 [shape = 'u8[1024]{0}', space=vmem, size = 0x400, scoped, tag = 'output window, operand 0, single buffered']
    %7 = vsyncpa [#allocation3], 0
    %8 = vsyncpa [#allocation6], 0
    %9 = vsyncpa [#allocation4], 0
    // Predicated region
    $region2: #{tpu_custom_call.1} parent=1 // pred_check
      _
    $region3: #{tpu_custom_call.1} parent=1 // pred_check_branch
      %11 = sbr.rel (0) target = $region5
    $region4: #{tpu_custom_call.1} parent=1 // pred_region
      %s13 = ssub.s32 16, 16
      %14 = vsyncadd [#allocation3], %s13
      %s16 = sshll.u32 [#allocation2], 4
      %s17 = int_to_ptr.vmem [resolvable:$true] %s16
      %19 = dma.hbm_to_vmem [thread:$0]  %s0, 16, %s17, [#allocation3]
    $region5: #{tpu_custom_call.1} parent=1 // pred_fallthru
      _
    // Predicated region
    $region6: #{tpu_custom_call.1} parent=1 // pred_check
      _
    $region7: #{tpu_custom_call.1} parent=1 // pred_check_branch
      %21 = sbr.rel (0) target = $region9
    $region8: #{tpu_custom_call.1} parent=1 // pred_region
      %s23 = ssub.s32 32, 32
      %24 = vsyncadd [#allocation6], %s23
      %s26 = sshll.u32 [#allocation5], 4
      %s27 = int_to_ptr.vmem [resolvable:$true] %s26
      %29 = dma.hbm_to_vmem [thread:$0]  %s1, 32, %s27, [#allocation6]
    $region9: #{tpu_custom_call.1} parent=1 // pred_fallthru
      _
    // Predicated region
    $region10: #{tpu_custom_call.1} parent=1 // pred_check
      _
    $region11: #{tpu_custom_call.1} parent=1 // pred_check_branch
      %31 = sbr.rel (0) target = $region13
    $region12: #{tpu_custom_call.1} parent=1 // pred_region
      %32 = dma.done [#allocation3], 16
    $region13: #{tpu_custom_call.1} parent=1 // pred_fallthru
      _
    // Predicated region
    $region14: #{tpu_custom_call.1} parent=1 // pred_check
      _
    $region15: #{tpu_custom_call.1} parent=1 // pred_check_branch
      %34 = sbr.rel (0) target = $region17
    $region16: #{tpu_custom_call.1} parent=1 // pred_region
      %35 = dma.done [#allocation6], 32
    $region17: #{tpu_custom_call.1} parent=1 // pred_fallthru
      _
    %v36 = vld [vmem:[#allocation5] sm:$0x3]
    %v37 = vld [vmem:[#allocation2] sm:$0x1]
    %v39 = vlaneseq
    %v40 = vshrl.u32 %v39, 7
    %v41 = vsub.s32 0, %v40
    %v42 = vrot.slane %v37, %v41
    %v44 = vmul.f32 %v36, %v42
    %45 = vst [vmem:[#allocation7] sm:$0x3] %v44
    // Predicated region
    $region18: #{tpu_custom_call.1} parent=1 // pred_check
      _
    $region19: #{tpu_custom_call.1} parent=1 // pred_check_branch
      %47 = sbr.rel (0) target = $region21
    $region20: #{tpu_custom_call.1} parent=1 // pred_region
      %s49 = ssub.s32 32, 32
      %50 = vsyncadd [#allocation4], %s49
      %s52 = sshll.u32 [#allocation7], 4
      %s53 = int_to_ptr.vmem [resolvable:$true] %s52
      %55 = dma.vmem_to_hbm [thread:$0]  %s53, 32, %s2, [#allocation4]
    $region21: #{tpu_custom_call.1} parent=1 // pred_fallthru
      _
    // Predicated region
    $region22: #{tpu_custom_call.1} parent=1 // pred_check
      _
    $region23: #{tpu_custom_call.1} parent=1 // pred_check_branch
      %57 = sbr.rel (0) target = $region25
    $region24: #{tpu_custom_call.1} parent=1 // pred_region
      %58 = dma.done [#allocation4], 32
    $region25: #{tpu_custom_call.1} parent=1 // pred_fallthru
      _
    %59 = vsyncpa [#allocation3], 1
    %60 = vsyncpa [#allocation6], 1
    %61 = vsyncpa [#allocation4], 1

</llo_original>
